<compile_context>
chip_gen: v7x
topology: tpu7x:2x2x1
jax: 0.10.0
libtpu: 0.0.40
codegen_flags: <defaults>
</compile_context>

<pallas_src>
import functools

import jax
import jax.numpy as jnp
import numpy as np
from jax.experimental import pallas as pl
from jax.experimental.pallas import tpu as pltpu


def _round_up(x, m):
    return -(-x // m) * m


def _channel_sums_kernel(x_ref, o_ref, *, n_channels):
    """Per-image sums for one batch tile.

    x_ref: (TB, C, R, 128) or (TB, C, HW), native dtype.
    o_ref: (1, TB, 3) f32 -> [raw ch-1 sum, softmaxed ch-1 sum, total sum].
    """
    sp = (slice(None),) * (x_ref.ndim - 2)        # spatial index slices

    def spatial_sum(v):                            # (TB, *S) -> (TB, 1)
        while v.ndim > 2:
            v = jnp.sum(v, axis=-1)
        return jnp.sum(v, axis=-1, keepdims=True)

    # Channel-1 plane: the only softmax plane we ever materialize.
    x1 = x_ref[(slice(None), 1) + sp].astype(jnp.float32)
    raw_s = spatial_sum(x1)
    tot_s = raw_s
    denom = jnp.zeros_like(x1)
    for c in range(n_channels):                    # static unroll; C-1 exps/pixel
        if c == 1:
            continue
        xc = x_ref[(slice(None), c) + sp].astype(jnp.float32)
        tot_s = tot_s + spatial_sum(xc)
        denom = denom + jnp.exp(xc - x1)
    # softmax(x)[1] == 1 / (1 + sum_{c!=1} exp(x_c - x_1)); exact reciprocal.
    p1 = pl.reciprocal(1.0 + denom, approx=False)
    soft_s = spatial_sum(p1)

    o_ref[...] = jnp.concatenate([raw_s, soft_s, tot_s], axis=-1)[None]


def _vmem_capacity_bytes():
    try:
        return int(pltpu.get_tpu_info().vmem_capacity_bytes)
    except Exception:
        return 64 * 1024 * 1024        # conservative fallback (v7x per-core VMEM)


@functools.lru_cache(maxsize=None)
def _build_log_barrier_fn(shape, dtype_name, low_band, high_band):
    B, C, H, W = shape
    assert C >= 2, "reference indexes channel 1 -> needs C >= 2"
    HW = H * W
    total_pixel_number = B * C * H * W
    itemsize = jnp.dtype(dtype_name).itemsize
    sublane_tile = 8 * max(1, 4 // itemsize)       # 8 (f32) / 16 (bf16) / 32 (i8)

    use_4d = (HW % 128) == 0
    if use_4d:
        R = HW // 128
        per_image_in = C * _round_up(R, sublane_tile) * 128 * itemsize
        spatial_f32 = _round_up(R, 8) * 128 * 4
    else:
        # TODO(synk): pad+mask HW to a 128 multiple instead of the padded-C layout.
        R = None
        per_image_in = _round_up(C, sublane_tile) * _round_up(HW, 128) * itemsize
        spatial_f32 = _round_up(HW, 128) * 4
    interm_per_image = 5 * spatial_f32             # x1, xc, exp, denom, p1 (f32)

    cap = _vmem_capacity_bytes()
    if cap >= 96 * (1 << 20):                      # v5e / v6e: 128 MiB physical
        vmem_limit = 64 * (1 << 20)
        block_cap = 8 * (1 << 20)
    else:                                          # v7x: 64 MiB physical per core
        vmem_limit = 44 * (1 << 20)
        block_cap = 7 * (1 << 20)

    per_image_vmem = 2 * per_image_in + interm_per_image   # 2x: double-buffered DMA
    tb = min(B,
             max(1, (vmem_limit * 3 // 4) // per_image_vmem),
             max(1, block_cap // per_image_in))
    if tb >= 8:
        tb = (tb // 8) * 8                         # sublane-aligned batch tile
    tb = max(1, min(tb, B))
    nb = pl.cdiv(B, tb)
    # TODO(synk): spatial tiling for images whose (C, H*W) slab alone exceeds VMEM.
    vmem_limit = min(max(vmem_limit, tb * per_image_vmem + (1 << 20)),
                     int(cap * 0.9))

    kernel = functools.partial(_channel_sums_kernel, n_channels=C)

    def impl(x):
        if use_4d:
            xr = x.reshape(B, C, R, 128)           # metadata-only reshape
            in_spec = pl.BlockSpec((tb, C, R, 128), lambda b: (b, 0, 0, 0))
        else:
            xr = x.reshape(B, C, HW)
            in_spec = pl.BlockSpec((tb, C, HW), lambda b: (b, 0, 0))
        sums = pl.pallas_call(
            kernel,
            out_shape=jax.ShapeDtypeStruct((nb, tb, 3), jnp.float32),
            grid=(nb,),
            in_specs=[in_spec],
            out_specs=pl.BlockSpec((1, tb, 3), lambda b: (b, 0, 0)),
            compiler_params=pltpu.CompilerParams(
                dimension_semantics=("parallel",),  # no cross-step state -> megacore
                vmem_limit_bytes=int(vmem_limit),
            ),
        )(xr)

        # O(B)-scalar barrier finalize (data-dependent bookkeeping) in plain JAX,
        # fused into the same jit program.  Padded rows (>= B) are garbage and
        # are sliced away before any reduction.
        sums = sums.reshape(nb * tb, 3)[:B]
        raw_s, soft_s, tot_s = sums[:, 0], sums[:, 1], sums[:, 2]
        mean_ch_sum = jnp.sum(tot_s) / jnp.float32(B * HW)
        s = jnp.where(mean_ch_sum != 1.0, soft_s, raw_s)        # (B,)
        n = jnp.float32(total_pixel_number)
        # Reference semantics: s_i >= high appends one (s_i-high)^2/N element;
        # s_i <= low appends the WHOLE (s-low)^2/N vector (B elements); else one 0.
        low_vec_sum = jnp.sum((s - low_band) ** 2) / n
        high_term = (s - high_band) ** 2 / n
        per_image = jnp.where(s >= high_band, high_term,
                              jnp.where(s <= low_band, low_vec_sum, 0.0))
        appended = jnp.where(s <= low_band, jnp.float32(B), jnp.float32(1.0))
        return jnp.sum(per_image) / jnp.sum(appended)

    return jax.jit(impl)


def log_barrier_loss(probability, low_band, high_band):
    fn = _build_log_barrier_fn(tuple(probability.shape),
                               jnp.dtype(probability.dtype).name,
                               float(low_band), float(high_band))
    return fn(probability)


def _reference(probability, low_band, high_band):
    # Pure-JAX transcription of the PyTorch forward (eager, data-dependent).
    B, C, H, W = probability.shape
    total = B * C * H * W
    p = probability
    if jnp.mean(jnp.sum(p, axis=1)) != 1.0:
        p = jax.nn.softmax(p, axis=1)
    s = jnp.sum(p[:, 1, :, :], axis=(-1, -2))
    parts = [jnp.zeros((1,), jnp.float32)]
    for i in range(B):
        si = s[i]
        if si >= high_band:
            loss = ((si - high_band) ** 2 / total).reshape(1)
        elif si <= low_band:
            loss = (s - low_band) ** 2 / total
        else:
            loss = jnp.zeros((1,), jnp.float32)
        parts.append(loss)
    loss_t = jnp.concatenate(parts)
    return jnp.sum(loss_t) / (loss_t.shape[0] - 1)


if __name__ == "__main__":
    key = jax.random.PRNGKey(0)
    B, C, H, W = 2, 4, 16, 16
    x = jax.random.normal(key, (B, C, H, W), dtype=jnp.float32)

    low_band, high_band = 60.0, 63.0   # module __init__ hyperparameters

    out = log_barrier_loss(x, low_band, high_band)
    jax.block_until_ready(out)

    ref = _reference(x, low_band, high_band)
    np.testing.assert_allclose(np.asarray(out), np.asarray(ref), rtol=1e-5, atol=1e-6)

    print("KERNEL_OK")
</pallas_src>

<mosaic_0001>
module attributes {stable_mosaic.version = 11 : i64} {
  func.func @_channel_sums_kernel(%arg0: i32, %arg1: memref<2x4x2x128xf32, #tpu.memory_space<vmem>>, %arg2: memref<1x2x3xf32, #tpu.memory_space<vmem>>) attributes {dimension_semantics = [#tpu.dimension_semantics<parallel>], iteration_bounds = array<i64: 1>, scalar_prefetch = 0 : i64, scratch_operands = 0 : i64, tpu.core_type = #tpu.core_type<tc>, window_params = [{transform_indices = @transform_0, window_bounds = array<i64: 2, 4, 2, 128>}, {transform_indices = @transform_1, window_bounds = array<i64: 1, 2, 3>}]} {
    %c0 = arith.constant 0 : index
    %c1 = arith.constant 1 : index
    %c0_0 = arith.constant 0 : index
    %c0_1 = arith.constant 0 : index
    %0 = vector.load %arg1[%c0, %c1, %c0_0, %c0_1] : memref<2x4x2x128xf32, #tpu.memory_space<vmem>>, vector<2x1x2x128xf32>
    %1 = vector.shape_cast %0 : vector<2x1x2x128xf32> to vector<2x2x128xf32>
    %cst = arith.constant dense<0.000000e+00> : vector<2x2xf32>
    %2 = vector.multi_reduction <add>, %1, %cst [2] : vector<2x2x128xf32> to vector<2x2xf32>
    %cst_2 = arith.constant dense<0.000000e+00> : vector<2xf32>
    %3 = vector.multi_reduction <add>, %2, %cst_2 [1] : vector<2x2xf32> to vector<2xf32>
    %4 = vector.shape_cast %3 : vector<2xf32> to vector<2x1xf32>
    %cst_3 = arith.constant 0.000000e+00 : f32
    %5 = vector.broadcast %cst_3 : f32 to vector<2x2x128xf32>
    %c0_4 = arith.constant 0 : index
    %c0_5 = arith.constant 0 : index
    %c0_6 = arith.constant 0 : index
    %c0_7 = arith.constant 0 : index
    %6 = vector.load %arg1[%c0_4, %c0_5, %c0_6, %c0_7] : memref<2x4x2x128xf32, #tpu.memory_space<vmem>>, vector<2x1x2x128xf32>
    %7 = vector.shape_cast %6 : vector<2x1x2x128xf32> to vector<2x2x128xf32>
    %cst_8 = arith.constant dense<0.000000e+00> : vector<2x2xf32>
    %8 = vector.multi_reduction <add>, %7, %cst_8 [2] : vector<2x2x128xf32> to vector<2x2xf32>
    %cst_9 = arith.constant dense<0.000000e+00> : vector<2xf32>
    %9 = vector.multi_reduction <add>, %8, %cst_9 [1] : vector<2x2xf32> to vector<2xf32>
    %10 = vector.shape_cast %9 : vector<2xf32> to vector<2x1xf32>
    %11 = arith.addf %4, %10 : vector<2x1xf32>
    %12 = arith.subf %7, %1 : vector<2x2x128xf32>
    %13 = math.exp %12 : vector<2x2x128xf32>
    %14 = arith.addf %5, %13 : vector<2x2x128xf32>
    %c0_10 = arith.constant 0 : index
    %c2 = arith.constant 2 : index
    %c0_11 = arith.constant 0 : index
    %c0_12 = arith.constant 0 : index
    %15 = vector.load %arg1[%c0_10, %c2, %c0_11, %c0_12] : memref<2x4x2x128xf32, #tpu.memory_space<vmem>>, vector<2x1x2x128xf32>
    %16 = vector.shape_cast %15 : vector<2x1x2x128xf32> to vector<2x2x128xf32>
    %cst_13 = arith.constant dense<0.000000e+00> : vector<2x2xf32>
    %17 = vector.multi_reduction <add>, %16, %cst_13 [2] : vector<2x2x128xf32> to vector<2x2xf32>
    %cst_14 = arith.constant dense<0.000000e+00> : vector<2xf32>
    %18 = vector.multi_reduction <add>, %17, %cst_14 [1] : vector<2x2xf32> to vector<2xf32>
    %19 = vector.shape_cast %18 : vector<2xf32> to vector<2x1xf32>
    %20 = arith.addf %11, %19 : vector<2x1xf32>
    %21 = arith.subf %16, %1 : vector<2x2x128xf32>
    %22 = math.exp %21 : vector<2x2x128xf32>
    %23 = arith.addf %14, %22 : vector<2x2x128xf32>
    %c0_15 = arith.constant 0 : index
    %c3 = arith.constant 3 : index
    %c0_16 = arith.constant 0 : index
    %c0_17 = arith.constant 0 : index
    %24 = vector.load %arg1[%c0_15, %c3, %c0_16, %c0_17] : memref<2x4x2x128xf32, #tpu.memory_space<vmem>>, vector<2x1x2x128xf32>
    %25 = vector.shape_cast %24 : vector<2x1x2x128xf32> to vector<2x2x128xf32>
    %cst_18 = arith.constant dense<0.000000e+00> : vector<2x2xf32>
    %26 = vector.multi_reduction <add>, %25, %cst_18 [2] : vector<2x2x128xf32> to vector<2x2xf32>
    %cst_19 = arith.constant dense<0.000000e+00> : vector<2xf32>
    %27 = vector.multi_reduction <add>, %26, %cst_19 [1] : vector<2x2xf32> to vector<2xf32>
    %28 = vector.shape_cast %27 : vector<2xf32> to vector<2x1xf32>
    %29 = arith.addf %20, %28 : vector<2x1xf32>
    %30 = arith.subf %25, %1 : vector<2x2x128xf32>
    %31 = math.exp %30 : vector<2x2x128xf32>
    %32 = arith.addf %23, %31 : vector<2x2x128xf32>
    %cst_20 = arith.constant 1.000000e+00 : f32
    %33 = vector.broadcast %cst_20 : f32 to vector<2x2x128xf32>
    %34 = arith.addf %33, %32 : vector<2x2x128xf32>
    %35 = tpu.reciprocal %34 : vector<2x2x128xf32> -> vector<2x2x128xf32>
    %cst_21 = arith.constant dense<0.000000e+00> : vector<2x2xf32>
    %36 = vector.multi_reduction <add>, %35, %cst_21 [2] : vector<2x2x128xf32> to vector<2x2xf32>
    %cst_22 = arith.constant dense<0.000000e+00> : vector<2xf32>
    %37 = vector.multi_reduction <add>, %36, %cst_22 [1] : vector<2x2xf32> to vector<2xf32>
    %38 = vector.shape_cast %37 : vector<2xf32> to vector<2x1xf32>
    %39 = tpu.concatenate %4, %38, %29 in 1 : vector<2x1xf32>, vector<2x1xf32>, vector<2x1xf32> -> vector<2x3xf32>
    %40 = vector.shape_cast %39 : vector<2x3xf32> to vector<1x2x3xf32>
    %c0_23 = arith.constant 0 : index
    %c0_24 = arith.constant 0 : index
    %c0_25 = arith.constant 0 : index
    %41 = vector.load %arg2[%c0_23, %c0_24, %c0_25] : memref<1x2x3xf32, #tpu.memory_space<vmem>>, vector<1x2x3xf32>
    tpu.vector_store %arg2[%c0_23, %c0_24, %c0_25], %40 {strides = array<i32>} : memref<1x2x3xf32, #tpu.memory_space<vmem>>, vector<1x2x3xf32>,
    return
  }
  func.func @transform_0(%arg0: i32) -> (i32, i32, i32, i32) {
    %c0_i32 = arith.constant 0 : i32
    %c0_i32_0 = arith.constant 0 : i32
    %c0_i32_1 = arith.constant 0 : i32
    %c0_i32_2 = arith.constant 0 : i32
    return %arg0, %c0_i32, %c0_i32_0, %c0_i32_1 : i32, i32, i32, i32
  }
  func.func @transform_1(%arg0: i32) -> (i32, i32, i32) {
    %c0_i32 = arith.constant 0 : i32
    %c0_i32_0 = arith.constant 0 : i32
    %c0_i32_1 = arith.constant 0 : i32
    return %arg0, %c0_i32, %c0_i32_0 : i32, i32, i32
  }
}

</mosaic_0001>

<llo_original>
// kernel: impl.1
$region0: #{impl.1}
  #allocation0 [shape = 'u32[]', space=smem, size = 0x4, offset = 0x4, fixed_abs, tag = 'smem constant byte address 0x4 - core index']
  #allocation1 [shape = 'u32[144,128]{1,0:T(1,128)}', space=vmem, size = 0x12000, scoped, tag = 'internal scratch']
  %s0 = inlined_call_operand.vmem [shape: f32[2,4,2,128], index: 0, kind: input, shape index: {}]
  %s1 = inlined_call_operand.vmem [shape: f32[1,2,3], index: 1, kind: output, shape index: {}]
  %s2 = sld [smem:[#allocation0]]
  $region14: #{impl.1} parent=0
    _
  %s4 = ssub.s32 1, %s2
  %s5 = scalar_select 0, %s4, %s2
  // Predicated region
  $region2: #{impl.1} parent=0 // pred_check
    _
  $region3: #{impl.1} parent=0 // pred_check_branch
    %7 = sbr.rel (0) target = $region5
  $region4: #{impl.1} parent=0 // pred_region
    _
  $region5: #{impl.1} parent=0 // pred_fallthru
    _
  %s8 = scalar_lea.vmem %s0, 2
  %v9 = vld [vmem:[%s8] sm:$0x3]
  %v10 = vld [vmem:[%s8 + $0x8] sm:$0x3]
  %vm11 = vcmask 1041408
  %v12 = vsel %vm11, %v9, 0.0
  %13 = vadd.xlane.f32.xlu0 %v12
  %v14 = vpop.xlane.xlu0 %13
  %v15 = vsel %vm11, %v10, 0.0
  %16 = vadd.xlane.f32.xlu0 %v15
  %v17 = vpop.xlane.xlu0 %16
  %v20 = vlaneseq
  %v21 = vand.u32 %v20, 127
  %v22 = vlaneseq
  %v23 = vshrl.u32 %v22, 7
  %v24 = vsub.s32 %v21, %v23
  %v25 = vrot.slane %v14, %v24
  %v26 = vlaneseq
  %v27 = vshrl.u32 %v26, 7
  %v28 = vsub.s32 %v21, %v27
  %v29 = vrot.slane %v17, %v28
  %vm30 = vcmask 1041409
  %v31 = vsel %vm30, %v29, %v25
  %vm33 = vcmask 9216
  %v34 = vsel %vm33, %v31, 0.0
  %35 = vadd.xlane.f32.xlu0 %v34
  %v36 = vpop.xlane.xlu0 %35
  %v37 = vld [vmem:[%s0] sm:$0x3]
  %v38 = vld [vmem:[%s0 + $0x8] sm:$0x3]
  %v39 = vsel %vm11, %v37, 0.0
  %40 = vadd.xlane.f32.xlu0 %v39
  %v41 = vpop.xlane.xlu0 %40
  %v42 = vsel %vm11, %v38, 0.0
  %43 = vadd.xlane.f32.xlu0 %v42
  %v44 = vpop.xlane.xlu0 %43
  %v47 = vlaneseq
  %v48 = vshrl.u32 %v47, 7
  %v49 = vsub.s32 %v21, %v48
  %v50 = vrot.slane %v41, %v49
  %v51 = vlaneseq
  %v52 = vshrl.u32 %v51, 7
  %v53 = vsub.s32 %v21, %v52
  %v54 = vrot.slane %v44, %v53
  %v55 = vsel %vm30, %v54, %v50
  %v57 = vsel %vm33, %v55, 0.0
  %58 = vadd.xlane.f32.xlu0 %v57
  %v59 = vpop.xlane.xlu0 %58
  %v60 = vadd.f32 %v36, %v59
  %v61 = vsub.f32 %v37, %v9
  %v62 = vsub.f32 %v38, %v10
  %v63 = vmul.f32 %v61, 1.442695
  %v64 = vpow.pop %v63
  %v65 = vmul.f32 %v62, 1.442695
  %v66 = vpow.pop %v65
  %v67 = vadd.f32 %v64, 0.0
  %v68 = vadd.f32 %v66, 0.0
  %s69 = scalar_lea.vmem %s0, 4
  %v70 = vld [vmem:[%s69] sm:$0x3]
  %v71 = vld [vmem:[%s69 + $0x8] sm:$0x3]
  %v72 = vsel %vm11, %v70, 0.0
  %73 = vadd.xlane.f32.xlu0 %v72
  %v74 = vpop.xlane.xlu0 %73
  %v75 = vsel %vm11, %v71, 0.0
  %76 = vadd.xlane.f32.xlu0 %v75
  %v77 = vpop.xlane.xlu0 %76
  %v80 = vlaneseq
  %v81 = vshrl.u32 %v80, 7
  %v82 = vsub.s32 %v21, %v81
  %v83 = vrot.slane %v74, %v82
  %v84 = vlaneseq
  %v85 = vshrl.u32 %v84, 7
  %v86 = vsub.s32 %v21, %v85
  %v87 = vrot.slane %v77, %v86
  %v88 = vsel %vm30, %v87, %v83
  %v90 = vsel %vm33, %v88, 0.0
  %91 = vadd.xlane.f32.xlu0 %v90
  %v92 = vpop.xlane.xlu0 %91
  %v93 = vadd.f32 %v60, %v92
  %v94 = vsub.f32 %v70, %v9
  %v95 = vsub.f32 %v71, %v10
  %v96 = vmul.f32 %v94, 1.442695
  %v97 = vpow.pop %v96
  %v98 = vmul.f32 %v95, 1.442695
  %v99 = vpow.pop %v98
  %v100 = vadd.f32 %v67, %v97
  %v101 = vadd.f32 %v68, %v99
  %s102 = scalar_lea.vmem %s0, 6
  %v103 = vld [vmem:[%s102] sm:$0x3]
  %v104 = vld [vmem:[%s102 + $0x8] sm:$0x3]
  %v105 = vsel %vm11, %v103, 0.0
  %106 = vadd.xlane.f32.xlu0 %v105
  %v107 = vpop.xlane.xlu0 %106
  %v108 = vsel %vm11, %v104, 0.0
  %109 = vadd.xlane.f32.xlu0 %v108
  %v110 = vpop.xlane.xlu0 %109
  %v113 = vlaneseq
  %v114 = vshrl.u32 %v113, 7
  %v115 = vsub.s32 %v21, %v114
  %v116 = vrot.slane %v107, %v115
  %v117 = vlaneseq
  %v118 = vshrl.u32 %v117, 7
  %v119 = vsub.s32 %v21, %v118
  %v120 = vrot.slane %v110, %v119
  %v121 = vsel %vm30, %v120, %v116
  %v123 = vsel %vm33, %v121, 0.0
  %124 = vadd.xlane.f32.xlu0 %v123
  %v125 = vpop.xlane.xlu0 %124
  %v126 = vadd.f32 %v93, %v125
  %v127 = vsub.f32 %v103, %v9
  %v128 = vsub.f32 %v104, %v10
  %v129 = vmul.f32 %v127, 1.442695
  %v130 = vpow.pop %v129
  %v131 = vmul.f32 %v128, 1.442695
  %v132 = vpow.pop %v131
  %v133 = vadd.f32 %v100, %v130
  %v134 = vadd.f32 %v101, %v132
  %v135 = vadd.f32 %v133, 1.0
  %v136 = vadd.f32 %v134, 1.0
  %v137 = vrcp.pop %v135
  %v138 = vrcp.pop %v136
  %v139 = vsel %vm11, %v137, 0.0
  %140 = vadd.xlane.f32.xlu0 %v139
  %v141 = vpop.xlane.xlu0 %140
  %v142 = vsel %vm11, %v138, 0.0
  %143 = vadd.xlane.f32.xlu0 %v142
  %v144 = vpop.xlane.xlu0 %143
  %v147 = vlaneseq
  %v148 = vshrl.u32 %v147, 7
  %v149 = vsub.s32 %v21, %v148
  %v150 = vrot.slane %v141, %v149
  %v151 = vlaneseq
  %v152 = vshrl.u32 %v151, 7
  %v153 = vsub.s32 %v21, %v152
  %v154 = vrot.slane %v144, %v153
  %v155 = vsel %vm30, %v154, %v150
  %v157 = vsel %vm33, %v155, 0.0
  %158 = vadd.xlane.f32.xlu0 %v157
  %v159 = vpop.xlane.xlu0 %158
  %vm160 = vcmask 7168
  %v161 = vsel %vm160, %v36, %v159
  %vm162 = vcmask 15360
  %v163 = vsel %vm162, %v161, %v126
  %vm164 = vcmask 17408
  %165 = vst.msk [vmem:[%s1] sm:$0x3] %vm164, %v163
  // Predicated region
  $region6: #{impl.1} parent=0 // pred_check
    _
  $region7: #{impl.1} parent=0 // pred_check_branch
    %167 = sbr.rel (0) target = $region9
  $region8: #{impl.1} parent=0 // pred_region
    _
  $region9: #{impl.1} parent=0 // pred_fallthru
    _
  // Predicated region
  $region10: #{impl.1} parent=0 // pred_check
    _
  $region11: #{impl.1} parent=0 // pred_check_branch
    %169 = sbr.rel (0) target = $region13
  $region12: #{impl.1} parent=0 // pred_region
    _
  $region13: #{impl.1} parent=0 // pred_fallthru
    _

</llo_original>
